<compile_context>
chip_gen: v7x
topology: tpu7x:2x2x1
jax: 0.10.0
libtpu: 0.0.40
codegen_flags: <defaults>
</compile_context>

<pallas_src>
import functools
import math

import jax
import jax.numpy as jnp
from jax.experimental import pallas as pl
from jax.experimental.pallas import tpu as pltpu


# ------------------------------ small helpers --------------------------------

def _round_up(x, m):
    return (x + m - 1) // m * m


def _pick_div(n, target, align=1):
    """Largest divisor of n that is <= target and a multiple of `align` (else n)."""
    if n <= target:
        return n
    for t in range(target, align - 1, -1):
        if n % t == 0 and t % align == 0:
            return t
    return n


@functools.lru_cache(maxsize=None)
def _vmem_limit_bytes():
    cap = 64 * 1024 * 1024
    try:
        cap = int(pltpu.get_tpu_info().vmem_capacity_bytes)
    except Exception:
        pass
    # ~25% headroom; never request more than 96 MiB (=> 48 MiB on v7x's 64 MiB VMEM).
    return max(16 * 1024 * 1024, min(cap * 3 // 4, 96 * 1024 * 1024))


def _cp(dims):
    return pltpu.CompilerParams(dimension_semantics=dims,
                                vmem_limit_bytes=_vmem_limit_bytes())


def _conv_row_tile(H, W, Cout):
    """Rows per grid step: keep M = th*W around 128-512 and the f32 acc <= ~128 KiB."""
    m_target = min(512, max(128, (128 * 1024) // (4 * max(Cout, 1))))
    return _pick_div(H, max(1, m_target // max(W, 1)))


# ------------------------------ Pallas kernels --------------------------------

def _mm_kernel(x_ref, w_ref, b_ref, o_ref, acc_ref, *, silu, scale):
    @pl.when(pl.program_id(2) == 0)
    def _():
        acc_ref[...] = jnp.zeros_like(acc_ref)
    acc_ref[...] += jnp.dot(x_ref[...], w_ref[...],
                            preferred_element_type=jnp.float32)

    @pl.when(pl.program_id(2) == pl.num_programs(2) - 1)
    def _():
        y = (acc_ref[...] + b_ref[...]) * scale
        if silu:
            y = y * jax.nn.sigmoid(y)
        o_ref[...] = y.astype(o_ref.dtype)


def _mm_res_kernel(x_ref, w_ref, b_ref, r_ref, o_ref, acc_ref, *, silu, scale):
    @pl.when(pl.program_id(2) == 0)
    def _():
        acc_ref[...] = jnp.zeros_like(acc_ref)
    acc_ref[...] += jnp.dot(x_ref[...], w_ref[...],
                            preferred_element_type=jnp.float32)

    @pl.when(pl.program_id(2) == pl.num_programs(2) - 1)
    def _():
        y = (acc_ref[...] + b_ref[...] + r_ref[...].astype(jnp.float32)) * scale
        if silu:
            y = y * jax.nn.sigmoid(y)
        o_ref[...] = y.astype(o_ref.dtype)


def _gn_stats_kernel(x_ref, s1_ref, s2_ref):
    # Per-block partial sums (no cross-step accumulation -> fully parallel grid).
    x = x_ref[...].astype(jnp.float32)                  # (1, th, W, C)
    s1_ref[...] = jnp.sum(x, axis=(0, 1, 2)).reshape(s1_ref.shape)
    s2_ref[...] = jnp.sum(x * x, axis=(0, 1, 2)).reshape(s2_ref.shape)


def _gn_apply_kernel(x_ref, mean_ref, inv_ref, g_ref, b_ref, o_ref, *, silu):
    x = x_ref[...].astype(jnp.float32)                  # (1, th, W, C)
    y = (x - mean_ref[...][:, None]) * inv_ref[...][:, None]
    y = y * g_ref[...][None, None] + b_ref[...][None, None]
    if silu:
        y = y * jax.nn.sigmoid(y)
    o_ref[...] = y.astype(o_ref.dtype)


def _gnconv3_kernel(*refs, apply_norm, silu, has_res, scale):
    """Fused (GroupNorm -> SiLU ->) 3x3 'same' conv (-> +residual -> *scale).

    One grid step = one batch element and th output rows. Inputs are the th body
    rows plus two clamped 1-row halos of the *unpadded* activation; conv padding
    is applied in VMEM, and the 9-tap conv is one im2col MXU matmul with
    M = th*W and K = 9*Cin.
    """
    if has_res:
        (top_ref, body_ref, bot_ref, mean_ref, inv_ref, g_ref, bt_ref,
         w_ref, b_ref, res_ref, o_ref) = refs
    else:
        (top_ref, body_ref, bot_ref, mean_ref, inv_ref, g_ref, bt_ref,
         w_ref, b_ref, o_ref) = refs
        res_ref = None

    th, W, Cin = body_ref.shape[1], body_ref.shape[2], body_ref.shape[3]
    Cout = w_ref.shape[1]
    r = pl.program_id(1)
    last = pl.num_programs(1) - 1

    def prep(rows):                                     # (n, W, Cin) bf16
        if not (apply_norm or silu):
            return rows
        t = rows.astype(jnp.float32)
        if apply_norm:
            t = (t - mean_ref[0]) * (inv_ref[0] * g_ref[...]) + bt_ref[...]
        if silu:
            t = t * jax.nn.sigmoid(t)
        return t.astype(jnp.bfloat16)

    # Halo rows outside the image are re-zeroed AFTER the norm (conv zero-pads
    # the normalized activation, not the raw input).
    top = prep(top_ref[0]) * (r > 0).astype(jnp.bfloat16)
    body = prep(body_ref[0])
    bot = prep(bot_ref[0]) * (r < last).astype(jnp.bfloat16)
    win = jnp.concatenate([top, body, bot], axis=0)     # (th+2, W, Cin)
    zcol = jnp.zeros((th + 2, 1, Cin), jnp.bfloat16)
    win = jnp.concatenate([zcol, win, zcol], axis=1)    # (th+2, W+2, Cin)

    # In-VMEM im2col -> single MXU matmul for this tile.
    cols = jnp.concatenate(
        [win[dy:dy + th, dx:dx + W, :] for dy in range(3) for dx in range(3)],
        axis=-1).reshape(th * W, 9 * Cin)
    out = jnp.dot(cols, w_ref[...], preferred_element_type=jnp.float32)
    out = out + b_ref[...]
    if has_res:
        out = out + res_ref[0].reshape(th * W, Cout).astype(jnp.float32)
    if scale != 1.0:
        out = out * scale
    o_ref[0] = out.reshape(th, W, Cout).astype(o_ref.dtype)


def _upconv_kernel(x_ref, w_ref, b_ref, o_ref):
    # ConvTranspose2d(k=2, s=2): th input rows -> (th, 2, W, 2*Cout) output block;
    # the (dy, dx) pixel interleave becomes a free row-major reshape in the wrapper.
    th, W, Cin = x_ref.shape[1], x_ref.shape[2], x_ref.shape[3]
    C2 = w_ref.shape[2]
    x = x_ref[0].reshape(th * W, Cin)                   # bf16
    bias = b_ref[...]                                   # (1, 2*Cout) f32
    for dy in range(2):
        y = jnp.dot(x, w_ref[dy], preferred_element_type=jnp.float32) + bias
        o_ref[0, :, dy] = y.reshape(th, W, C2).astype(o_ref.dtype)


def _attn_kernel(q_ref, k_ref, v_ref, o_ref, *, scale):
    # TODO(synk): flash-style online-softmax KV tiling (and single-buffered KV)
    # for very large N / v7x VMEM budgets left as future work; current VMEM use
    # is O(tq * N) plus the resident K/V blocks.
    q = q_ref[0]                                        # (tq, C) bf16
    k = k_ref[0]                                        # (N, C) bf16
    v = v_ref[0]                                        # (N, C) bf16
    s = jax.lax.dot_general(q, k, (((1,), (1,)), ((), ())),
                            preferred_element_type=jnp.float32) * scale
    s = s - jnp.max(s, axis=-1, keepdims=True)
    p = jnp.exp(s)
    denom = jnp.sum(p, axis=-1, keepdims=True)
    p = p * pl.reciprocal(denom, approx=True)
    o = jnp.dot(p.astype(jnp.bfloat16), v, preferred_element_type=jnp.float32)
    o_ref[0] = o.astype(o_ref.dtype)


# ------------------------------ cached builders --------------------------------

@functools.lru_cache(maxsize=None)
def _build_matmul(M, K, N, tm, tn, tk, has_res, silu, scale):
    x_spec = pl.BlockSpec((tm, tk), lambda i, j, k: (i, k))
    w_spec = pl.BlockSpec((tk, tn), lambda i, j, k: (k, j))
    b_spec = pl.BlockSpec((1, tn), lambda i, j, k: (0, j))
    o_spec = pl.BlockSpec((tm, tn), lambda i, j, k: (i, j))
    if has_res:
        kern = functools.partial(_mm_res_kernel, silu=silu, scale=scale)
        in_specs = [x_spec, w_spec, b_spec,
                    pl.BlockSpec((tm, tn), lambda i, j, k: (i, j))]
    else:
        kern = functools.partial(_mm_kernel, silu=silu, scale=scale)
        in_specs = [x_spec, w_spec, b_spec]
    return pl.pallas_call(
        kern,
        out_shape=jax.ShapeDtypeStruct((M, N), jnp.bfloat16),
        grid=(M // tm, N // tn, K // tk),
        in_specs=in_specs,
        out_specs=o_spec,
        scratch_shapes=[pltpu.VMEM((tm, tn), jnp.float32)],
        compiler_params=_cp(("parallel", "parallel", "arbitrary")),
    )


@functools.lru_cache(maxsize=None)
def _build_gn_stats(B, H, W, C, th):
    nblk = H // th
    x_spec = pl.BlockSpec((1, th, W, C), lambda b, r: (b, r, 0, 0))
    s_spec = pl.BlockSpec((1, 1, 1, C), lambda b, r: (b, r, 0, 0))
    return pl.pallas_call(
        _gn_stats_kernel,
        out_shape=(jax.ShapeDtypeStruct((B, nblk, 1, C), jnp.float32),
                   jax.ShapeDtypeStruct((B, nblk, 1, C), jnp.float32)),
        grid=(B, nblk),
        in_specs=[x_spec],
        out_specs=(s_spec, s_spec),
        compiler_params=_cp(("parallel", "parallel")),
    )


@functools.lru_cache(maxsize=None)
def _build_gn_apply(B, H, W, C, th, silu):
    x_spec = pl.BlockSpec((1, th, W, C), lambda b, r: (b, r, 0, 0))
    vec_spec = pl.BlockSpec((1, 1, C), lambda b, r: (b, 0, 0))
    par_spec = pl.BlockSpec((1, C), lambda b, r: (0, 0))
    return pl.pallas_call(
        functools.partial(_gn_apply_kernel, silu=silu),
        out_shape=jax.ShapeDtypeStruct((B, H, W, C), jnp.bfloat16),
        grid=(B, H // th),
        in_specs=[x_spec, vec_spec, vec_spec, par_spec, par_spec],
        out_specs=x_spec,
        compiler_params=_cp(("parallel", "parallel")),
    )


@functools.lru_cache(maxsize=None)
def _build_gnconv3(B, H, W, Cin, Cout, th, apply_norm, silu, has_res, scale):
    kern = functools.partial(_gnconv3_kernel, apply_norm=apply_norm, silu=silu,
                             has_res=has_res, scale=scale)
    # Body rows + two clamped 1-row halos read straight from the unpadded input.
    top_spec = pl.BlockSpec((1, 1, W, Cin),
                            lambda b, r: (b, jnp.maximum(r * th - 1, 0), 0, 0))
    body_spec = pl.BlockSpec((1, th, W, Cin), lambda b, r: (b, r, 0, 0))
    bot_spec = pl.BlockSpec((1, 1, W, Cin),
                            lambda b, r: (b, jnp.minimum(r * th + th, H - 1), 0, 0))
    vec_spec = pl.BlockSpec((1, 1, Cin), lambda b, r: (b, 0, 0))
    par_spec = pl.BlockSpec((1, Cin), lambda b, r: (0, 0))
    w_spec = pl.BlockSpec((9 * Cin, Cout), lambda b, r: (0, 0))
    bias_spec = pl.BlockSpec((1, Cout), lambda b, r: (0, 0))
    in_specs = [top_spec, body_spec, bot_spec, vec_spec, vec_spec,
                par_spec, par_spec, w_spec, bias_spec]
    if has_res:
        in_specs.append(pl.BlockSpec((1, th, W, Cout), lambda b, r: (b, r, 0, 0)))
    out_spec = pl.BlockSpec((1, th, W, Cout), lambda b, r: (b, r, 0, 0))
    return pl.pallas_call(
        kern,
        out_shape=jax.ShapeDtypeStruct((B, H, W, Cout), jnp.bfloat16),
        grid=(B, H // th),
        in_specs=in_specs,
        out_specs=out_spec,
        compiler_params=_cp(("parallel", "parallel")),
    )


@functools.lru_cache(maxsize=None)
def _build_upconv(B, H, W, Cin, C2, th):
    return pl.pallas_call(
        _upconv_kernel,
        out_shape=jax.ShapeDtypeStruct((B, H, 2, W, C2), jnp.bfloat16),
        grid=(B, H // th),
        in_specs=[pl.BlockSpec((1, th, W, Cin), lambda b, r: (b, r, 0, 0)),
                  pl.BlockSpec((2, Cin, C2), lambda b, r: (0, 0, 0)),
                  pl.BlockSpec((1, C2), lambda b, r: (0, 0))],
        out_specs=pl.BlockSpec((1, th, 2, W, C2), lambda b, r: (b, r, 0, 0, 0)),
        compiler_params=_cp(("parallel", "parallel")),
    )


@functools.lru_cache(maxsize=None)
def _build_attn(B, N, C, tq, scale, packed):
    # When `packed`, inputs are three views into one (B, N, 3C) qkv buffer via
    # channel-offset block indices (no q/k/v re-slicing copies through HBM).
    q_spec = pl.BlockSpec((1, tq, C), lambda b, i: (b, i, 0))
    if packed:
        k_spec = pl.BlockSpec((1, N, C), lambda b, i: (b, 0, 1))
        v_spec = pl.BlockSpec((1, N, C), lambda b, i: (b, 0, 2))
    else:
        k_spec = pl.BlockSpec((1, N, C), lambda b, i: (b, 0, 0))
        v_spec = pl.BlockSpec((1, N, C), lambda b, i: (b, 0, 0))
    o_spec = pl.BlockSpec((1, tq, C), lambda b, i: (b, i, 0))
    return pl.pallas_call(
        functools.partial(_attn_kernel, scale=scale),
        out_shape=jax.ShapeDtypeStruct((B, N, C), jnp.bfloat16),
        grid=(B, N // tq),
        in_specs=[q_spec, k_spec, v_spec],
        out_specs=o_spec,
        compiler_params=_cp(("parallel", "parallel")),
    )


# ------------------------------ op wrappers --------------------------------

def _matmul_bias(x2d, w, b, residual=None, scale=1.0, silu=False):
    M, K = x2d.shape
    N = w.shape[1]
    if M >= 512:
        tm = 256 if (M % 512 != 0 and M % 256 == 0) else 512
    else:
        tm = _round_up(M, 8)
    Mp = _round_up(M, tm)
    tn = _pick_div(N, 512, 128)
    tk = _pick_div(K, 512, 128)
    if Mp != M:
        x2d = jnp.pad(x2d, ((0, Mp - M), (0, 0)))
        if residual is not None:
            residual = jnp.pad(residual, ((0, Mp - M), (0, 0)))
    b2 = b.reshape(1, N).astype(jnp.float32)
    call = _build_matmul(Mp, K, N, tm, tn, tk, residual is not None,
                         bool(silu), float(scale))
    xb = x2d.astype(jnp.bfloat16)
    wb = w.astype(jnp.bfloat16)
    if residual is None:
        out = call(xb, wb, b2)
    else:
        out = call(xb, wb, b2, residual.astype(jnp.bfloat16))
    return out[:M] if Mp != M else out


def conv1x1(x, w, b):
    B, H, W, Cin = x.shape
    y = _matmul_bias(x.reshape(B * H * W, Cin), w, b)
    return y.reshape(B, H, W, -1)


def gn_moments(x, num_groups, eps=1e-5):
    """Per-(batch, channel) GroupNorm mean / inv-std, expanded to channel width."""
    # TODO(synk): eps follows torch.nn.GroupNorm default (1e-5); SD checkpoints may use 1e-6.
    B, H, W, C = x.shape
    th = _pick_div(H, 64)
    s1, s2 = _build_gn_stats(B, H, W, C, th)(x)          # (B, H//th, 1, C) partials
    cg = C // num_groups
    n = float(H * W * cg)
    s1g = s1.reshape(B, -1, num_groups, cg).sum(axis=(1, 3))
    s2g = s2.reshape(B, -1, num_groups, cg).sum(axis=(1, 3))
    mean = s1g / n
    var = jnp.maximum(s2g / n - mean * mean, 0.0)
    inv = jax.lax.rsqrt(var + eps)
    mean_c = jnp.repeat(mean, cg, axis=-1).reshape(B, 1, C)
    inv_c = jnp.repeat(inv, cg, axis=-1).reshape(B, 1, C)
    return mean_c, inv_c


def _gn_apply(x, mean_c, inv_c, gamma, beta, silu=False):
    B, H, W, C = x.shape
    th = _pick_div(H, 64)
    return _build_gn_apply(B, H, W, C, th, bool(silu))(x, mean_c, inv_c, gamma, beta)


def conv3x3(x, w, b, norm=None, silu=False, residual=None, scale=1.0):
    """3x3 same conv with optional fused GroupNorm(+SiLU) prologue, residual, scale."""
    B, H, W, Cin = x.shape
    Cout = w.shape[-1]
    th = _conv_row_tile(H, W, Cout)
    if norm is None:
        mean_c = jnp.zeros((B, 1, Cin), jnp.float32)
        inv_c = jnp.ones((B, 1, Cin), jnp.float32)
        gamma = jnp.ones((1, Cin), jnp.float32)
        beta = jnp.zeros((1, Cin), jnp.float32)
        apply_norm = False
    else:
        mean_c, inv_c, gamma, beta = norm
        apply_norm = True
    w9 = w.reshape(9 * Cin, Cout).astype(jnp.bfloat16)   # (dy, dx, cin)-major rows
    xb = x.astype(jnp.bfloat16)
    args = [xb, xb, xb, mean_c, inv_c, gamma, beta,
            w9, b.reshape(1, Cout).astype(jnp.float32)]
    if residual is not None:
        args.append(residual.astype(jnp.bfloat16))
    call = _build_gnconv3(B, H, W, Cin, Cout, th, apply_norm, bool(silu),
                          residual is not None, float(scale))
    return call(*args)


def conv_transpose2x2(x, w2, b2):
    # w2: (2, Cin, 2*Cout) with columns ordered (dx, cout); b2: (1, 2*Cout).
    B, H, W, Cin = x.shape
    C2 = w2.shape[-1]
    m_target = min(512, max(128, (128 * 1024) // (4 * max(C2, 1))))
    th = _pick_div(H, max(1, m_target // max(W, 1)))
    out = _build_upconv(B, H, W, Cin, C2, th)(x.astype(jnp.bfloat16), w2, b2)
    # (B, H, 2, W, 2*Cout) -> (B, 2H, 2W, Cout): free row-major pixel interleave.
    return out.reshape(B, 2 * H, 2 * W, C2 // 2)


def attention_block(x, p):
    # TODO(synk): VAttentionBlock source not provided; standard SD-VAE single-head
    # GroupNorm(32) -> qkv -> softmax -> proj -> +residual assumed.
    B, H, W, C = x.shape
    N = H * W
    mean_c, inv_c = gn_moments(x, 32)
    xn = _gn_apply(x, mean_c, inv_c, p['gn_g'], p['gn_b'], silu=False)
    qkv = _matmul_bias(xn.reshape(B * N, C), p['wqkv'], p['bqkv'])   # (B*N, 3C)
    tq = _pick_div(N, 256, 8)
    scale = 1.0 / math.sqrt(C)
    if C % 128 == 0:
        qkv3 = qkv.reshape(B, N, 3 * C)
        attn = _build_attn(B, N, C, tq, scale, True)(qkv3, qkv3, qkv3)
    else:
        qkv4 = qkv.reshape(B, N, 3, C)
        q, k, v = qkv4[:, :, 0], qkv4[:, :, 1], qkv4[:, :, 2]
        attn = _build_attn(B, N, C, tq, scale, False)(q, k, v)
    out = _matmul_bias(attn.reshape(B * N, C), p['wo'], p['bo'],
                       residual=x.reshape(B * N, C))
    return out.reshape(B, H, W, C)


def residual_block(x, p, num_groups):
    m1, i1 = gn_moments(x, num_groups)
    h = conv3x3(x, p['w1'], p['b1'],
                norm=(m1, i1, p['gn1_g'], p['gn1_b']), silu=True)
    m2, i2 = gn_moments(h, num_groups)
    if 'skip_w' in p:
        skip = conv1x1(x, p['skip_w'], p['skip_b'])
    else:
        skip = x
    return conv3x3(h, p['w2'], p['b2'],
                   norm=(m2, i2, p['gn2_g'], p['gn2_b']), silu=True,
                   residual=skip)


def upscale(x, p):
    x = conv_transpose2x2(x, p['up_w'], p['up_b'])
    return conv3x3(x, p['w'], p['b'])


# ------------------------------ parameter init --------------------------------

# TODO(synk): channel-major (B, Cpad, H, W) final store would remove the trailing
# NHWC->NCHW transpose entirely; kept channels-last with a small pad for safety.
_OUT_PAD = 8  # lane padding of the final conv's Cout (3 -> 8)


def _init_conv(key, kh, kw, cin, cout):
    w = (jax.random.normal(key, (kh, kw, cin, cout), jnp.float32) * 0.05)
    return w.astype(jnp.bfloat16), jnp.zeros((cout,), jnp.float32)


def _init_resblock(keys, cin, cout):
    p = {'gn1_g': jnp.ones((1, cin), jnp.float32),
         'gn1_b': jnp.zeros((1, cin), jnp.float32),
         'gn2_g': jnp.ones((1, cout), jnp.float32),
         'gn2_b': jnp.zeros((1, cout), jnp.float32)}
    p['w1'], p['b1'] = _init_conv(next(keys), 3, 3, cin, cout)
    p['w2'], p['b2'] = _init_conv(next(keys), 3, 3, cout, cout)
    if cin != cout:
        sw = jax.random.normal(next(keys), (cin, cout), jnp.float32) * 0.05
        p['skip_w'] = sw.astype(jnp.bfloat16)
        p['skip_b'] = jnp.zeros((cout,), jnp.float32)
    return p


def _init_attn(keys, c):
    return {
        'gn_g': jnp.ones((1, c), jnp.float32),
        'gn_b': jnp.zeros((1, c), jnp.float32),
        'wqkv': (jax.random.normal(next(keys), (c, 3 * c), jnp.float32) * 0.05
                 ).astype(jnp.bfloat16),
        'bqkv': jnp.zeros((3 * c,), jnp.float32),
        'wo': (jax.random.normal(next(keys), (c, c), jnp.float32) * 0.05
               ).astype(jnp.bfloat16),
        'bo': jnp.zeros((c,), jnp.float32),
    }


def _init_upscale(keys, cin, cout):
    # NOTE: weight kept locally as (Cin, kH, kW, Cout); PyTorch ConvTranspose2d
    # stores (Cin, Cout, kH, kW) -- permute accordingly when importing checkpoints.
    w = jax.random.normal(next(keys), (cin, 2, 2, cout), jnp.float32) * 0.05
    w2 = jnp.transpose(w, (1, 0, 2, 3)).reshape(2, cin, 2 * cout).astype(jnp.bfloat16)
    b = jnp.zeros((cout,), jnp.float32)
    p = {'up_w': w2, 'up_b': jnp.tile(b, 2).reshape(1, 2 * cout)}
    p['w'], p['b'] = _init_conv(next(keys), 3, 3, cout, cout)
    return p


def init_vdecoder_params(key, z_dims, base_channels, num_groups):
    del num_groups  # group count is passed at forward time
    keys = iter(jax.random.split(key, 64))
    b4, b2, b1 = base_channels * 4, base_channels * 2, base_channels
    params = {}
    pq_w, pq_b = _init_conv(next(keys), 1, 1, z_dims, b4)
    params['post_quant_w'] = pq_w.reshape(z_dims, b4)
    params['post_quant_b'] = pq_b
    params['up0_w'], params['up0_b'] = _init_conv(next(keys), 3, 3, b4, b4)

    stages = [('rb', _init_resblock(keys, b4, b4)),
              ('attn', _init_attn(keys, b4))]
    for _ in range(3):
        stages.append(('rb', _init_resblock(keys, b4, b4)))
    stages.append(('up', _init_upscale(keys, b4, b4)))
    for _ in range(3):
        stages.append(('rb', _init_resblock(keys, b4, b4)))
    stages.append(('up', _init_upscale(keys, b4, b4)))
    stages.append(('rb', _init_resblock(keys, b4, b2)))
    for _ in range(2):
        stages.append(('rb', _init_resblock(keys, b2, b2)))
    stages.append(('up', _init_upscale(keys, b2, b2)))
    stages.append(('rb', _init_resblock(keys, b2, b1)))
    for _ in range(2):
        stages.append(('rb', _init_resblock(keys, b1, b1)))
    params['stages'] = stages

    params['gn_out_g'] = jnp.ones((1, b1), jnp.float32)
    params['gn_out_b'] = jnp.zeros((1, b1), jnp.float32)
    ow, ob = _init_conv(next(keys), 3, 3, b1, 3)
    params['out_w'] = jnp.pad(ow, ((0, 0), (0, 0), (0, 0), (0, _OUT_PAD - 3)))
    params['out_b'] = jnp.pad(ob, ((0, _OUT_PAD - 3),))
    return params


# ------------------------------ forward pass --------------------------------

def vdecoder_forward(z_nchw, params, num_groups, z_scale_factor=1.0):
    x = jnp.transpose(z_nchw, (0, 2, 3, 1)).astype(jnp.bfloat16)     # NCHW -> NHWC
    x = conv1x1(x, params['post_quant_w'], params['post_quant_b'])   # post_quant_conv
    x = conv3x3(x, params['up0_w'], params['up0_b'])                 # first conv of Up
    for kind, p in params['stages']:
        if kind == 'rb':
            x = residual_block(x, p, num_groups)
        elif kind == 'attn':
            x = attention_block(x, p)
        else:
            x = upscale(x, p)
    # final GroupNorm + SiLU fused into conv_out; output scale = 1/z_scale_factor
    mo, io = gn_moments(x, num_groups)
    x = conv3x3(x, params['out_w'], params['out_b'],
                norm=(mo, io, params['gn_out_g'], params['gn_out_b']),
                silu=True, scale=1.0 / z_scale_factor)
    x = x[..., :3].astype(jnp.float32)                               # un-pad Cout 8 -> 3
    return jnp.transpose(x, (0, 3, 1, 2))                            # NHWC -> NCHW


if __name__ == "__main__":
    key = jax.random.PRNGKey(0)
    kz, kp = jax.random.split(key)
    base_channels, num_groups, z_dims = 32, 8, 4
    z = jax.random.normal(kz, (2, z_dims, 4, 4), jnp.float32)        # NCHW latent
    params = init_vdecoder_params(kp, z_dims, base_channels, num_groups)
    out = vdecoder_forward(z, params, num_groups, z_scale_factor=1.0)
    out = jax.block_until_ready(out)
    assert out.shape == (2, 3, 32, 32), out.shape
    assert bool(jnp.isfinite(out).all())
    print("KERNEL_OK")
</pallas_src>

<mosaic_0001>
module attributes {stable_mosaic.version = 11 : i64} {
  func.func @_mm_kernel(%arg0: i32, %arg1: i32, %arg2: i32, %arg3: memref<32x4xbf16, #tpu.memory_space<vmem>>, %arg4: memref<4x128xbf16, #tpu.memory_space<vmem>>, %arg5: memref<1x128xf32, #tpu.memory_space<vmem>>, %arg6: memref<32x128xbf16, #tpu.memory_space<vmem>>, %arg7: memref<32x128xf32, #tpu.memory_space<vmem>>) attributes {dimension_semantics = [#tpu.dimension_semantics<parallel>, #tpu.dimension_semantics<parallel>, #tpu.dimension_semantics<arbitrary>], iteration_bounds = array<i64: 1, 1, 1>, scalar_prefetch = 0 : i64, scratch_operands = 1 : i64, tpu.core_type = #tpu.core_type<tc>, window_params = [{transform_indices = @transform_0, window_bounds = array<i64: 32, 4>}, {transform_indices = @transform_1, window_bounds = array<i64: 4, 128>}, {transform_indices = @transform_2, window_bounds = array<i64: 1, 128>}, {transform_indices = @transform_3, window_bounds = array<i64: 32, 128>}]} {
    %c0_i32 = arith.constant 0 : i32
    %0 = arith.cmpi eq, %arg2, %c0_i32 : i32
    %1 = arith.extui %0 : i1 to i32
    %c0_i32_0 = arith.constant 0 : i32
    %2 = arith.cmpi ne, %1, %c0_i32_0 : i32
    scf.if %2 {
      %cst_10 = arith.constant 0.000000e+00 : f32
      %12 = vector.broadcast %cst_10 : f32 to vector<32x128xf32>
      %c0_11 = arith.constant 0 : index
      %c0_12 = arith.constant 0 : index
      %13 = vector.load %arg7[%c0_11, %c0_12] : memref<32x128xf32, #tpu.memory_space<vmem>>, vector<32x128xf32>
      tpu.vector_store %arg7[%c0_11, %c0_12], %12 {strides = array<i32>} : memref<32x128xf32, #tpu.memory_space<vmem>>, vector<32x128xf32>,
    } else {
    }
    %c0 = arith.constant 0 : index
    %c0_1 = arith.constant 0 : index
    %3 = vector.load %arg7[%c0, %c0_1] : memref<32x128xf32, #tpu.memory_space<vmem>>, vector<32x128xf32>
    %c0_2 = arith.constant 0 : index
    %c0_3 = arith.constant 0 : index
    %4 = vector.load %arg3[%c0_2, %c0_3] : memref<32x4xbf16, #tpu.memory_space<vmem>>, vector<32x4xbf16>
    %c0_4 = arith.constant 0 : index
    %c0_5 = arith.constant 0 : index
    %5 = vector.load %arg4[%c0_4, %c0_5] : memref<4x128xbf16, #tpu.memory_space<vmem>>, vector<4x128xbf16>
    %cst = arith.constant dense<0.000000e+00> : vector<32x128xf32>
    %6 = tpu.matmul %4, %5, %cst {dimension_numbers = #tpu.dot_dimension_numbers<[1], [0], [0], [1], [0, 0, 1, 1], [], []>} : vector<32x4xbf16>, vector<4x128xbf16>, vector<32x128xf32> -> vector<32x128xf32>
    %7 = arith.addf %3, %6 : vector<32x128xf32>
    %c0_6 = arith.constant 0 : index
    %c0_7 = arith.constant 0 : index
    %8 = vector.load %arg7[%c0_6, %c0_7] : memref<32x128xf32, #tpu.memory_space<vmem>>, vector<32x128xf32>
    tpu.vector_store %arg7[%c0_6, %c0_7], %7 {strides = array<i32>} : memref<32x128xf32, #tpu.memory_space<vmem>>, vector<32x128xf32>,
    %c0_i32_8 = arith.constant 0 : i32
    %9 = arith.cmpi eq, %arg2, %c0_i32_8 : i32
    %10 = arith.extui %9 : i1 to i32
    %c0_i32_9 = arith.constant 0 : i32
    %11 = arith.cmpi ne, %10, %c0_i32_9 : i32
    scf.if %11 {
      %c0_10 = arith.constant 0 : index
      %c0_11 = arith.constant 0 : index
      %12 = vector.load %arg7[%c0_10, %c0_11] : memref<32x128xf32, #tpu.memory_space<vmem>>, vector<32x128xf32>
      %c0_12 = arith.constant 0 : index
      %c0_13 = arith.constant 0 : index
      %13 = vector.load %arg5[%c0_12, %c0_13] : memref<1x128xf32, #tpu.memory_space<vmem>>, vector<1x128xf32>
      %14 = vector.broadcast %13 : vector<1x128xf32> to vector<32x128xf32>
      %15 = arith.addf %12, %14 : vector<32x128xf32>
      %cst_14 = arith.constant 1.000000e+00 : f32
      %16 = vector.broadcast %cst_14 : f32 to vector<32x128xf32>
      %17 = arith.mulf %15, %16 : vector<32x128xf32>
      %18 = arith.truncf %17 : vector<32x128xf32> to vector<32x128xbf16>
      %c0_15 = arith.constant 0 : index
      %c0_16 = arith.constant 0 : index
      %19 = vector.load %arg6[%c0_15, %c0_16] : memref<32x128xbf16, #tpu.memory_space<vmem>>, vector<32x128xbf16>
      tpu.vector_store %arg6[%c0_15, %c0_16], %18 {strides = array<i32>} : memref<32x128xbf16, #tpu.memory_space<vmem>>, vector<32x128xbf16>,
    } else {
    }
    return
  }
  func.func @transform_0(%arg0: i32, %arg1: i32, %arg2: i32) -> (i32, i32) {
    %c0_i32 = arith.constant 0 : i32
    return %arg0, %arg2 : i32, i32
  }
  func.func @transform_1(%arg0: i32, %arg1: i32, %arg2: i32) -> (i32, i32) {
    %c0_i32 = arith.constant 0 : i32
    return %arg2, %arg1 : i32, i32
  }
  func.func @transform_2(%arg0: i32, %arg1: i32, %arg2: i32) -> (i32, i32) {
    %c0_i32 = arith.constant 0 : i32
    %c0_i32_0 = arith.constant 0 : i32
    return %c0_i32, %arg1 : i32, i32
  }
  func.func @transform_3(%arg0: i32, %arg1: i32, %arg2: i32) -> (i32, i32) {
    %c0_i32 = arith.constant 0 : i32
    return %arg0, %arg1 : i32, i32
  }
}

</mosaic_0001>

<llo_original>
// kernel: tpu_custom_call.1
$region0: #{tpu_custom_call.1}
  #allocation0 [shape = 'u32[]', space=smem, size = 0x4, offset = 0x4, fixed_abs, tag = 'smem constant byte address 0x4 - core index']
  #allocation1 [shape = 'u32[144,128]{1,0:T(1,128)}', space=vmem, size = 0x12000, scoped, tag = 'internal scratch']
  #allocation2 [shape = 'f32[32,128]{1,0:T(8,128)}', space=vmem, size = 0x4000, scoped, tag = 'scratch operand']
  %s0 = inlined_call_operand.vmem [shape: bf16[32,4], index: 0, kind: input, shape index: {}]
  %s1 = inlined_call_operand.vmem [shape: bf16[4,128], index: 1, kind: input, shape index: {}]
  %s2 = inlined_call_operand.vmem [shape: f32[1,128], index: 2, kind: input, shape index: {}]
  %s3 = inlined_call_operand.hbm [shape: bf16[32,128], index: 3, kind: output, shape index: {}]
  %s4 = sld [smem:[#allocation0]]
  $region30: #{tpu_custom_call.1} parent=0
    _
  %s6 = ssub.s32 1, %s4
  %s7 = scalar_select 0, %s6, %s4
  $region1: #{tpu_custom_call.1} parent=0
    #allocation3 [shape = 'u8[8192]{0}', space=vmem, size = 0x2000, scoped, tag = 'output window, operand 0, single buffered']
    #allocation4 [shape = 's32[1]{0}', space=sflag, size = 0x4, scoped, tag = 'scoped memory for tpu_custom_call.1']
    %8 = vsyncpa [#allocation4], 0
    // Predicated region
    $region2: #{tpu_custom_call.1} parent=1 // pred_check
      _
    $region3: #{tpu_custom_call.1} parent=1 // pred_check_branch
      %10 = sbr.rel (0) target = $region5
    $region4: #{tpu_custom_call.1} parent=1 // pred_region
      _
    $region5: #{tpu_custom_call.1} parent=1 // pred_fallthru
      _
    // Predicated region
    $region6: #{tpu_custom_call.1} parent=1 // pred_check
      _
    $region7: #{tpu_custom_call.1} parent=1 // pred_check_branch
      %12 = sbr.rel (0) target = $region9
    $region8: #{tpu_custom_call.1} parent=1 // pred_region
      _
    $region9: #{tpu_custom_call.1} parent=1 // pred_fallthru
      _
    // Predicated region
    $region10: #{tpu_custom_call.1} parent=1 // pred_check
      _
    $region11: #{tpu_custom_call.1} parent=1 // pred_check_branch
      %14 = sbr.rel (0) target = $region13
    $region12: #{tpu_custom_call.1} parent=1 // pred_region
      _
    $region13: #{tpu_custom_call.1} parent=1 // pred_fallthru
      _
    %p16 = scmp.eq.s32.totalorder 0, 0
    // Predicated region
    $region14: #{tpu_custom_call.1} parent=1 // pred_check
      %p17 = pneg %p16
    $region15: #{tpu_custom_call.1} parent=1 // pred_check_branch
      %19 = sbr.rel (%p17) target = $region17
    $region16: #{tpu_custom_call.1} parent=1 // pred_region
      %20 = vst [vmem:[#allocation2] sm:$0xff] 0.0
      %21 = vst [vmem:[#allocation2 + $0x8] sm:$0xff] 0.0
      %22 = vst [vmem:[#allocation2 + $0x10] sm:$0xff] 0.0
      %23 = vst [vmem:[#allocation2 + $0x18] sm:$0xff] 0.0
    $region17: #{tpu_custom_call.1} parent=1 // pred_fallthru
      _
    %v24 = vld [vmem:[#allocation2] sm:$0xff]
    %v25 = vld [vmem:[#allocation2 + $0x8] sm:$0xff]
    %v26 = vld [vmem:[#allocation2 + $0x10] sm:$0xff]
    %v27 = vld [vmem:[#allocation2 + $0x18] sm:$0xff]
    %v28 = vld [vmem:[%s0] sm:$0xf]
    %v29 = vld [vmem:[%s0 + $0x4] sm:$0xf]
    %v30 = vld [vmem:[%s0 + $0x8] sm:$0xf]
    %v31 = vld [vmem:[%s0 + $0xc] sm:$0xf]
    %v32 = vld [vmem:[%s1] sm:$0x3]
    %v37 = vunpack.c.l.b16 %v28
    %v38 = vunpack.c.l.b16 %v29
    %v39 = vunpack.c.l.b16 %v30
    %v40 = vunpack.c.l.b16 %v31
    %v41 = vpack.c.b16 %v38, %v37
    %v42 = vpack.c.b16 %v40, %v39
    %vm43 = vcmask 31744
    %v45 = vsel %vm43, %v41, 0
    %v48 = vsel %vm43, %v42, 0
    %vm50 = vcmask 1041408
    %v52 = vsel %vm50, %v32, 0
    %54 = vmatprep.subr.bf16.mxu0 0
    %55 = vmatpush1.bf16.msra.mxu0 %v52
    %56 = vmatprep.subr.bf16.mxu0 0
    %57 = vmatpush1.bf16.msra.mxu0 0
    %58 = vmatprep.subr.bf16.mxu0 0
    %59 = vmatpush1.bf16.msra.mxu0 0
    %60 = vmatprep.subr.bf16.mxu0 0
    %61 = vmatpush1.bf16.msra.mxu0 0
    %62 = vmatprep.subr.bf16.mxu0 0
    %63 = vmatpush1.bf16.msra.mxu0 0
    %64 = vmatprep.subr.bf16.mxu0 0
    %65 = vmatpush1.bf16.msra.mxu0 0
    %66 = vmatprep.subr.bf16.mxu0 0
    %67 = vmatpush1.bf16.msra.mxu0 0
    %68 = vmatprep.subr.bf16.mxu0 0
    %69 = vmatpush1.bf16.msra.mxu0 0
    %70 = vmatprep.subr.bf16.mxu0 0
    %71 = vmatpush1.bf16.msra.mxu0 0
    %72 = vmatprep.subr.bf16.mxu0 0
    %73 = vmatpush1.bf16.msra.mxu0 0
    %74 = vmatprep.subr.bf16.mxu0 0
    %75 = vmatpush1.bf16.msra.mxu0 0
    %76 = vmatprep.subr.bf16.mxu0 0
    %77 = vmatpush1.bf16.msra.mxu0 0
    %78 = vmatprep.subr.bf16.mxu0 0
    %79 = vmatpush1.bf16.msra.mxu0 0
    %80 = vmatprep.subr.bf16.mxu0 0
    %81 = vmatpush1.bf16.msra.mxu0 0
    %82 = vmatprep.subr.bf16.mxu0 0
    %83 = vmatpush1.bf16.msra.mxu0 0
    %84 = vmatprep.subr.bf16.mxu0 0
    %85 = vmatpush1.bf16.msra.mxu0 0
    %86 = vmatprep.mubr.bf16.mxu0 0
    %87 = vmatmul.mubr.bf16.gmra.mrb[0].mxu0 %v45
    %v88 = vpop.f32.mrb[0].mxu0
    %v89 = vadd.f32 0.0, %v88
    %v90 = vpop.f32.mrb[0].mxu0
    %v91 = vpop.f32.mrb[0].mxu0
    %v92 = vadd.f32 0.0, %v91
    %v93 = vpop.f32.mrb[0].mxu0
    %94 = vmatprep.mubr.bf16.mxu0 0
    %95 = vmatmul.mubr.bf16.gmra.mrb[0].mxu0 %v48
    %v96 = vpop.f32.mrb[0].mxu0
    %v97 = vadd.f32 0.0, %v96
    %v98 = vpop.f32.mrb[0].mxu0
    %v99 = vpop.f32.mrb[0].mxu0
    %v100 = vadd.f32 0.0, %v99
    %v101 = vpop.f32.mrb[0].mxu0
    %102 = vdwg.mxu0
    %v103 = vadd.f32 %v24, %v89
    %v104 = vadd.f32 %v25, %v92
    %v105 = vadd.f32 %v26, %v97
    %v106 = vadd.f32 %v27, %v100
    %107 = vst [vmem:[#allocation2] sm:$0xff] %v103
    %108 = vst [vmem:[#allocation2 + $0x8] sm:$0xff] %v104
    %109 = vst [vmem:[#allocation2 + $0x10] sm:$0xff] %v105
    %110 = vst [vmem:[#allocation2 + $0x18] sm:$0xff] %v106
    // Predicated region
    $region18: #{tpu_custom_call.1} parent=1 // pred_check
      %p111 = pneg %p16
    $region19: #{tpu_custom_call.1} parent=1 // pred_check_branch
      %113 = sbr.rel (%p111) target = $region21
    $region20: #{tpu_custom_call.1} parent=1 // pred_region
      %v114 = vld [vmem:[#allocation2] sm:$0xff]
      %v115 = vld [vmem:[#allocation2 + $0x8] sm:$0xff]
      %v116 = vld [vmem:[#allocation2 + $0x10] sm:$0xff]
      %v117 = vld [vmem:[#allocation2 + $0x18] sm:$0xff]
      %v118 = vld [vmem:[%s2] sm:$0x1]
      %v120 = vlaneseq
      %v121 = vshrl.u32 %v120, 7
      %v122 = vsub.s32 0, %v121
      %v123 = vrot.slane %v118, %v122
      %v125 = vadd.f32 %v114, %v123
      %v126 = vadd.f32 %v115, %v123
      %v127 = vadd.f32 %v116, %v123
      %v128 = vadd.f32 %v117, %v123
      %v129 = vpack.c.bf16 %v126, %v125
      %v130 = vpack.c.bf16 %v128, %v127
      %v133 = vunpack.c.l.b16 %v129
      %v134 = vunpack.c.h.b16 %v129
      %v135 = vunpack.c.l.b16 %v130
      %v136 = vunpack.c.h.b16 %v130
      %v137 = vpack.c.b16 %v133, %v133
      %v138 = vpack.c.b16 %v134, %v134
      %v139 = vpack.c.b16 %v135, %v135
      %v140 = vpack.c.b16 %v136, %v136
      %145 = vst [vmem:[#allocation3] sm:$0xf] %v137
      %146 = vst [vmem:[#allocation3 + $0x4] sm:$0xf] %v138
      %147 = vst [vmem:[#allocation3 + $0x8] sm:$0xf] %v139
      %148 = vst [vmem:[#allocation3 + $0xc] sm:$0xf] %v140
    $region21: #{tpu_custom_call.1} parent=1 // pred_fallthru
      _
    // Predicated region
    $region22: #{tpu_custom_call.1} parent=1 // pred_check
      _
    $region23: #{tpu_custom_call.1} parent=1 // pred_check_branch
      %150 = sbr.rel (0) target = $region25
    $region24: #{tpu_custom_call.1} parent=1 // pred_region
      %s152 = ssub.s32 256, 256
      %153 = vsyncadd [#allocation4], %s152
      %s154 = sshll.u32 [#allocation3], 4
      %s155 = int_to_ptr.vmem [resolvable:$true] %s154
      %160 = dma.vmem_to_hbm [thread:$0]  %s155, 256, %s3, [#allocation4], 64, 64, 4
    $region25: #{tpu_custom_call.1} parent=1 // pred_fallthru
      _
    // Predicated region
    $region26: #{tpu_custom_call.1} parent=1 // pred_check
      _
    $region27: #{tpu_custom_call.1} parent=1 // pred_check_branch
      %162 = sbr.rel (0) target = $region29
    $region28: #{tpu_custom_call.1} parent=1 // pred_region
      %163 = dma.done [#allocation4], 256
    $region29: #{tpu_custom_call.1} parent=1 // pred_fallthru
      _
    %164 = vsyncpa [#allocation4], 1

</llo_original>
